<compile_context>
chip_gen: v6e
topology: v6e:2x2x1
jax: 0.10.0
libtpu: 0.0.40
codegen_flags: <defaults>
</compile_context>

<pallas_src>
import functools
import math

import jax
import jax.numpy as jnp
from jax.experimental import pallas as pl
from jax.experimental.pallas import tpu as pltpu


def _head_kernel(feat_ref, w_ref, b_ref, out_ref, *, tb, hw):
    # feat_ref : (TB*HW, C)  bf16/f32 — batch-tile of spatial rows, C on the lane axis
    # w_ref    : (C, T)      f32, pre-scaled by 1/(H*W)  (avg-pool folded into matmul)
    # b_ref    : (1, T)      f32
    # out_ref  : (TB, T)     f32
    feat = feat_ref[...].astype(jnp.float32)          # explicit upcast (v5e: no bf16 VPU)
    # MXU matmul with M = TB*HW rows; K = C = 1280 is a clean multiple of 128.
    part = jnp.dot(feat, w_ref[...], preferred_element_type=jnp.float32)  # (TB*HW, T)
    # Spatial reduction of the tiny post-matmul result; the reshape only splits the
    # sublane axis (TB*HW is sublane-aligned), so it is layout-free.
    pooled = jnp.sum(part.reshape(tb, hw, part.shape[-1]), axis=1)        # (TB, T)
    out_ref[...] = (pooled + b_ref[...]).astype(out_ref.dtype)


def _pick_batch_tile(b, hw, batch_tile):
    """Largest TB <= batch_tile that divides B and keeps every block tile-legal.

    Legal means: TB == B (blocks equal the full array dims), or TB is a multiple of 8
    (which makes both the (TB, T) output block and the (TB*HW, C) feature block
    sublane-aligned).
    """
    tb = min(batch_tile, b)
    while tb > 1 and (b % tb or (tb != b and tb % 8)):
        tb -= 1
    if b % tb or (tb != b and tb % 8):
        tb = b  # fall back to a single full-batch block (always legal)
    return tb


def efficientnet_head(feat_nhwc, weight, bias, *, batch_tile=8):
    """Global average pool + Linear(1280, T) head.

    feat_nhwc: (B, H, W, C) channels-last backbone features (bf16 or f32).
    weight:    (C, T) f32.   bias: (T,) f32.
    Returns:   (B, T) f32.
    """
    B, H, W, C = feat_nhwc.shape
    HW = H * W
    T = weight.shape[1]

    TB = _pick_batch_tile(B, HW, batch_tile)
    grid = (B // TB,)

    # Free reshape (channels-last is contiguous) — no transpose, no extra HBM pass.
    feat2d = feat_nhwc.reshape(B * HW, C)
    # Fold the average pool's 1/(H*W) into the weight once.
    w_scaled = weight.astype(jnp.float32) * (1.0 / float(HW))
    bias2d = bias.reshape(1, T).astype(jnp.float32)

    kernel = functools.partial(_head_kernel, tb=TB, hw=HW)

    # VMEM per step (double-buffered bf16 feature tile + resident f32 weight) is
    # ~2*TB*HW*C*2B + C*T*4B  ->  well under the scoped default for TB<=8, HW<=49.
    out = pl.pallas_call(
        kernel,
        out_shape=jax.ShapeDtypeStruct((B, T), jnp.float32),
        grid=grid,
        in_specs=[
            pl.BlockSpec((TB * HW, C), lambda i: (i, 0)),    # batch tile of spatial rows
            pl.BlockSpec((C, T), lambda i: (0, 0)),          # weight resident across grid
            pl.BlockSpec((1, T), lambda i: (0, 0)),          # bias resident across grid
        ],
        out_specs=pl.BlockSpec((TB, T), lambda i: (i, 0)),
        compiler_params=pltpu.CompilerParams(
            dimension_semantics=("parallel",),               # shard batch across TCs (v7x)
        ),
    )(feat2d, w_scaled, bias2d)
    return out


if __name__ == "__main__":
    key = jax.random.PRNGKey(0)
    k_feat, k_w, k_b = jax.random.split(key, 3)

    B, H, W, C = 2, 4, 4, 1280        # feature map after extract_features on a 128x128 image
    NUM_TARGETS = 8                   # config.num_targets

    # Synthetic backbone output: channels-last and bf16 at the source (the "backbone"
    # emits this directly — no NCHW->NHWC transpose, half the feature DMA bytes).
    feat = jax.random.normal(k_feat, (B, H, W, C), dtype=jnp.float32).astype(jnp.bfloat16)

    # Deterministic Linear(1280, num_targets) init (PyTorch-style uniform bound).
    bound = 1.0 / math.sqrt(C)
    weight = jax.random.uniform(k_w, (C, NUM_TARGETS), jnp.float32, -bound, bound)
    bias = jax.random.uniform(k_b, (NUM_TARGETS,), jnp.float32, -bound, bound)

    out = efficientnet_head(feat, weight, bias)
    out = jax.block_until_ready(out)

    # Reference: identical math (mean-pool over H,W then Linear) in f32 on the same
    # bf16 feature map the kernel consumes.
    feat_f32 = feat.astype(jnp.float32)
    ref = jnp.mean(feat_f32, axis=(1, 2)) @ weight + bias

    assert out.shape == (B, NUM_TARGETS)
    assert jnp.allclose(out, ref, atol=1e-4, rtol=1e-3), "mismatch vs reference"

    print("KERNEL_OK")
</pallas_src>

<mosaic_0001>
module attributes {stable_mosaic.version = 11 : i64} {
  func.func @_head_kernel(%arg0: i32, %arg1: memref<32x1280xbf16, #tpu.memory_space<vmem>>, %arg2: memref<1280x8xf32, #tpu.memory_space<vmem>>, %arg3: memref<1x8xf32, #tpu.memory_space<vmem>>, %arg4: memref<2x8xf32, #tpu.memory_space<vmem>>) attributes {dimension_semantics = [#tpu.dimension_semantics<parallel>], iteration_bounds = array<i64: 1>, scalar_prefetch = 0 : i64, scratch_operands = 0 : i64, tpu.core_type = #tpu.core_type<tc>, window_params = [{transform_indices = @transform_0, window_bounds = array<i64: 32, 1280>}, {pipeline_mode = #tpu.pipeline_mode<synchronous>, transform_indices = @transform_1, window_bounds = array<i64: 1280, 8>}, {pipeline_mode = #tpu.pipeline_mode<synchronous>, transform_indices = @transform_2, window_bounds = array<i64: 1, 8>}, {transform_indices = @transform_3, window_bounds = array<i64: 2, 8>}]} {
    %c0 = arith.constant 0 : index
    %c0_0 = arith.constant 0 : index
    %0 = vector.load %arg1[%c0, %c0_0] : memref<32x1280xbf16, #tpu.memory_space<vmem>>, vector<32x1280xbf16>
    %1 = arith.extf %0 : vector<32x1280xbf16> to vector<32x1280xf32>
    %c0_1 = arith.constant 0 : index
    %c0_2 = arith.constant 0 : index
    %2 = vector.load %arg2[%c0_1, %c0_2] : memref<1280x8xf32, #tpu.memory_space<vmem>>, vector<1280x8xf32>
    %cst = arith.constant dense<0.000000e+00> : vector<32x8xf32>
    %3 = tpu.matmul %1, %2, %cst {dimension_numbers = #tpu.dot_dimension_numbers<[1], [0], [0], [1], [0, 0, 1, 1], [], []>} : vector<32x1280xf32>, vector<1280x8xf32>, vector<32x8xf32> -> vector<32x8xf32>
    %4 = vector.shape_cast %3 : vector<32x8xf32> to vector<2x16x8xf32>
    %cst_3 = arith.constant dense<0.000000e+00> : vector<2x8xf32>
    %5 = vector.multi_reduction <add>, %4, %cst_3 [1] : vector<2x16x8xf32> to vector<2x8xf32>
    %c0_4 = arith.constant 0 : index
    %c0_5 = arith.constant 0 : index
    %6 = vector.load %arg3[%c0_4, %c0_5] : memref<1x8xf32, #tpu.memory_space<vmem>>, vector<1x8xf32>
    %7 = vector.broadcast %6 : vector<1x8xf32> to vector<2x8xf32>
    %8 = arith.addf %5, %7 : vector<2x8xf32>
    %c0_6 = arith.constant 0 : index
    %c0_7 = arith.constant 0 : index
    %9 = vector.load %arg4[%c0_6, %c0_7] : memref<2x8xf32, #tpu.memory_space<vmem>>, vector<2x8xf32>
    tpu.vector_store %arg4[%c0_6, %c0_7], %8 {strides = array<i32>} : memref<2x8xf32, #tpu.memory_space<vmem>>, vector<2x8xf32>,
    return
  }
  func.func @transform_0(%arg0: i32) -> (i32, i32) {
    %c0_i32 = arith.constant 0 : i32
    %c0_i32_0 = arith.constant 0 : i32
    return %arg0, %c0_i32 : i32, i32
  }
  func.func @transform_1(%arg0: i32) -> (i32, i32) {
    %c0_i32 = arith.constant 0 : i32
    %c0_i32_0 = arith.constant 0 : i32
    %c0_i32_1 = arith.constant 0 : i32
    return %c0_i32, %c0_i32_0 : i32, i32
  }
  func.func @transform_2(%arg0: i32) -> (i32, i32) {
    %c0_i32 = arith.constant 0 : i32
    %c0_i32_0 = arith.constant 0 : i32
    %c0_i32_1 = arith.constant 0 : i32
    return %c0_i32, %c0_i32_0 : i32, i32
  }
  func.func @transform_3(%arg0: i32) -> (i32, i32) {
    %c0_i32 = arith.constant 0 : i32
    %c0_i32_0 = arith.constant 0 : i32
    return %arg0, %c0_i32 : i32, i32
  }
}

</mosaic_0001>

<llo_original>
// kernel: tpu_custom_call.1
$region0: #{tpu_custom_call.1}
  #allocation0 [shape = 'u32[]', space=smem, size = 0x4, offset = 0x4, fixed_abs, tag = 'smem constant byte address 0x4 - core index']
  #allocation1 [shape = 'u32[144,128]{1,0:T(1,128)}', space=vmem, size = 0x12000, scoped, tag = 'internal scratch']
  %s0 = inlined_call_operand.vmem [shape: bf16[32,1280], index: 0, kind: input, shape index: {}]
  %s1 = inlined_call_operand.vmem [shape: f32[1280,8], index: 1, kind: input, shape index: {}]
  %s2 = inlined_call_operand.vmem [shape: f32[1,8], index: 2, kind: input, shape index: {}]
  %s3 = inlined_call_operand.hbm [shape: f32[2,8], index: 3, kind: output, shape index: {}]
  %s4 = sld [smem:[#allocation0]]
  $region22: #{tpu_custom_call.1} parent=0
    _
  %s6 = ssub.s32 1, %s4
  %s7 = scalar_select 0, %s6, %s4
  $region1: #{tpu_custom_call.1} parent=0
    #allocation2 [shape = 'u8[1024]{0}', space=vmem, size = 0x400, scoped, tag = 'output window, operand 0, single buffered']
    #allocation3 [shape = 's32[1]{0}', space=sflag, size = 0x4, scoped, tag = 'scoped memory for tpu_custom_call.1']
    %8 = vsyncpa [#allocation3], 0
    // Predicated region
    $region2: #{tpu_custom_call.1} parent=1 // pred_check
      _
    $region3: #{tpu_custom_call.1} parent=1 // pred_check_branch
      %10 = sbr.rel (0) target = $region5
    $region4: #{tpu_custom_call.1} parent=1 // pred_region
      _
    $region5: #{tpu_custom_call.1} parent=1 // pred_fallthru
      _
    // Predicated region
    $region6: #{tpu_custom_call.1} parent=1 // pred_check
      _
    $region7: #{tpu_custom_call.1} parent=1 // pred_check_branch
      %12 = sbr.rel (0) target = $region9
    $region8: #{tpu_custom_call.1} parent=1 // pred_region
      _
    $region9: #{tpu_custom_call.1} parent=1 // pred_fallthru
      _
    // Predicated region
    $region10: #{tpu_custom_call.1} parent=1 // pred_check
      _
    $region11: #{tpu_custom_call.1} parent=1 // pred_check_branch
      %14 = sbr.rel (0) target = $region13
    $region12: #{tpu_custom_call.1} parent=1 // pred_region
      _
    $region13: #{tpu_custom_call.1} parent=1 // pred_fallthru
      _
    %v15 = vld [vmem:[%s0] sm:$0xff]
    %v16 = vld [vmem:[%s0 + $0x8] sm:$0xff]
    %v17 = vld [vmem:[%s0 + $0x10] sm:$0xff]
    %v18 = vld [vmem:[%s0 + $0x18] sm:$0xff]
    %v19 = vld [vmem:[%s0 + $0x20] sm:$0xff]
    %v20 = vld [vmem:[%s0 + $0x28] sm:$0xff]
    %v21 = vld [vmem:[%s0 + $0x30] sm:$0xff]
    %v22 = vld [vmem:[%s0 + $0x38] sm:$0xff]
    %v23 = vld [vmem:[%s0 + $0x40] sm:$0xff]
    %v24 = vld [vmem:[%s0 + $0x48] sm:$0xff]
    %v25 = vld [vmem:[%s0 + $0x50] sm:$0xff]
    %v26 = vld [vmem:[%s0 + $0x58] sm:$0xff]
    %v27 = vld [vmem:[%s0 + $0x60] sm:$0xff]
    %v28 = vld [vmem:[%s0 + $0x68] sm:$0xff]
    %v29 = vld [vmem:[%s0 + $0x70] sm:$0xff]
    %v30 = vld [vmem:[%s0 + $0x78] sm:$0xff]
    %v31 = vld [vmem:[%s0 + $0x80] sm:$0xff]
    %v32 = vld [vmem:[%s0 + $0x88] sm:$0xff]
    %v33 = vld [vmem:[%s0 + $0x90] sm:$0xff]
    %v34 = vld [vmem:[%s0 + $0x98] sm:$0xff]
    %v35 = vunpack.c.l.bf16 %v15
    %v36 = vunpack.c.h.bf16 %v15
    %v37 = vunpack.c.l.bf16 %v16
    %v38 = vunpack.c.h.bf16 %v16
    %v39 = vunpack.c.l.bf16 %v17
    %v40 = vunpack.c.h.bf16 %v17
    %v41 = vunpack.c.l.bf16 %v18
    %v42 = vunpack.c.h.bf16 %v18
    %v43 = vunpack.c.l.bf16 %v19
    %v44 = vunpack.c.h.bf16 %v19
    %v45 = vunpack.c.l.bf16 %v20
    %v46 = vunpack.c.h.bf16 %v20
    %v47 = vunpack.c.l.bf16 %v21
    %v48 = vunpack.c.h.bf16 %v21
    %v49 = vunpack.c.l.bf16 %v22
    %v50 = vunpack.c.h.bf16 %v22
    %v51 = vunpack.c.l.bf16 %v23
    %v52 = vunpack.c.h.bf16 %v23
    %v53 = vunpack.c.l.bf16 %v24
    %v54 = vunpack.c.h.bf16 %v24
    %v55 = vunpack.c.l.bf16 %v25
    %v56 = vunpack.c.h.bf16 %v25
    %v57 = vunpack.c.l.bf16 %v26
    %v58 = vunpack.c.h.bf16 %v26
    %v59 = vunpack.c.l.bf16 %v27
    %v60 = vunpack.c.h.bf16 %v27
    %v61 = vunpack.c.l.bf16 %v28
    %v62 = vunpack.c.h.bf16 %v28
    %v63 = vunpack.c.l.bf16 %v29
    %v64 = vunpack.c.h.bf16 %v29
    %v65 = vunpack.c.l.bf16 %v30
    %v66 = vunpack.c.h.bf16 %v30
    %v67 = vunpack.c.l.bf16 %v31
    %v68 = vunpack.c.h.bf16 %v31
    %v69 = vunpack.c.l.bf16 %v32
    %v70 = vunpack.c.h.bf16 %v32
    %v71 = vunpack.c.l.bf16 %v33
    %v72 = vunpack.c.h.bf16 %v33
    %v73 = vunpack.c.l.bf16 %v34
    %v74 = vunpack.c.h.bf16 %v34
    %v75 = vld [vmem:[%s1] sm:$0xff]
    %v76 = vld [vmem:[%s1 + $0x8] sm:$0xff]
    %v77 = vld [vmem:[%s1 + $0x10] sm:$0xff]
    %v78 = vld [vmem:[%s1 + $0x18] sm:$0xff]
    %v79 = vld [vmem:[%s1 + $0x20] sm:$0xff]
    %v80 = vld [vmem:[%s1 + $0x28] sm:$0xff]
    %v81 = vld [vmem:[%s1 + $0x30] sm:$0xff]
    %v82 = vld [vmem:[%s1 + $0x38] sm:$0xff]
    %v83 = vld [vmem:[%s1 + $0x40] sm:$0xff]
    %v84 = vld [vmem:[%s1 + $0x48] sm:$0xff]
    %v85 = vld [vmem:[%s1 + $0x50] sm:$0xff]
    %v86 = vld [vmem:[%s1 + $0x58] sm:$0xff]
    %v87 = vld [vmem:[%s1 + $0x60] sm:$0xff]
    %v88 = vld [vmem:[%s1 + $0x68] sm:$0xff]
    %v89 = vld [vmem:[%s1 + $0x70] sm:$0xff]
    %v90 = vld [vmem:[%s1 + $0x78] sm:$0xff]
    %v91 = vld [vmem:[%s1 + $0x80] sm:$0xff]
    %v92 = vld [vmem:[%s1 + $0x88] sm:$0xff]
    %v93 = vld [vmem:[%s1 + $0x90] sm:$0xff]
    %v94 = vld [vmem:[%s1 + $0x98] sm:$0xff]
    %v95 = vld [vmem:[%s1 + $0xa0] sm:$0xff]
    %v96 = vld [vmem:[%s1 + $0xa8] sm:$0xff]
    %v97 = vld [vmem:[%s1 + $0xb0] sm:$0xff]
    %v98 = vld [vmem:[%s1 + $0xb8] sm:$0xff]
    %v99 = vld [vmem:[%s1 + $0xc0] sm:$0xff]
    %v100 = vld [vmem:[%s1 + $0xc8] sm:$0xff]
    %v101 = vld [vmem:[%s1 + $0xd0] sm:$0xff]
    %v102 = vld [vmem:[%s1 + $0xd8] sm:$0xff]
    %v103 = vld [vmem:[%s1 + $0xe0] sm:$0xff]
    %v104 = vld [vmem:[%s1 + $0xe8] sm:$0xff]
    %v105 = vld [vmem:[%s1 + $0xf0] sm:$0xff]
    %v106 = vld [vmem:[%s1 + $0xf8] sm:$0xff]
    %v107 = vld [vmem:[%s1 + $0x100] sm:$0xff]
    %v108 = vld [vmem:[%s1 + $0x108] sm:$0xff]
    %v109 = vld [vmem:[%s1 + $0x110] sm:$0xff]
    %v110 = vld [vmem:[%s1 + $0x118] sm:$0xff]
    %v111 = vld [vmem:[%s1 + $0x120] sm:$0xff]
    %v112 = vld [vmem:[%s1 + $0x128] sm:$0xff]
    %v113 = vld [vmem:[%s1 + $0x130] sm:$0xff]
    %v114 = vld [vmem:[%s1 + $0x138] sm:$0xff]
    %v115 = vld [vmem:[%s1 + $0x140] sm:$0xff]
    %v116 = vld [vmem:[%s1 + $0x148] sm:$0xff]
    %v117 = vld [vmem:[%s1 + $0x150] sm:$0xff]
    %v118 = vld [vmem:[%s1 + $0x158] sm:$0xff]
    %v119 = vld [vmem:[%s1 + $0x160] sm:$0xff]
    %v120 = vld [vmem:[%s1 + $0x168] sm:$0xff]
    %v121 = vld [vmem:[%s1 + $0x170] sm:$0xff]
    %v122 = vld [vmem:[%s1 + $0x178] sm:$0xff]
    %v123 = vld [vmem:[%s1 + $0x180] sm:$0xff]
    %v124 = vld [vmem:[%s1 + $0x188] sm:$0xff]
    %v125 = vld [vmem:[%s1 + $0x190] sm:$0xff]
    %v126 = vld [vmem:[%s1 + $0x198] sm:$0xff]
    %v127 = vld [vmem:[%s1 + $0x1a0] sm:$0xff]
    %v128 = vld [vmem:[%s1 + $0x1a8] sm:$0xff]
    %v129 = vld [vmem:[%s1 + $0x1b0] sm:$0xff]
    %v130 = vld [vmem:[%s1 + $0x1b8] sm:$0xff]
    %v131 = vld [vmem:[%s1 + $0x1c0] sm:$0xff]
    %v132 = vld [vmem:[%s1 + $0x1c8] sm:$0xff]
    %v133 = vld [vmem:[%s1 + $0x1d0] sm:$0xff]
    %v134 = vld [vmem:[%s1 + $0x1d8] sm:$0xff]
    %v135 = vld [vmem:[%s1 + $0x1e0] sm:$0xff]
    %v136 = vld [vmem:[%s1 + $0x1e8] sm:$0xff]
    %v137 = vld [vmem:[%s1 + $0x1f0] sm:$0xff]
    %v138 = vld [vmem:[%s1 + $0x1f8] sm:$0xff]
    %v139 = vld [vmem:[%s1 + $0x200] sm:$0xff]
    %v140 = vld [vmem:[%s1 + $0x208] sm:$0xff]
    %v141 = vld [vmem:[%s1 + $0x210] sm:$0xff]
    %v142 = vld [vmem:[%s1 + $0x218] sm:$0xff]
    %v143 = vld [vmem:[%s1 + $0x220] sm:$0xff]
    %v144 = vld [vmem:[%s1 + $0x228] sm:$0xff]
    %v145 = vld [vmem:[%s1 + $0x230] sm:$0xff]
    %v146 = vld [vmem:[%s1 + $0x238] sm:$0xff]
    %v147 = vld [vmem:[%s1 + $0x240] sm:$0xff]
    %v148 = vld [vmem:[%s1 + $0x248] sm:$0xff]
    %v149 = vld [vmem:[%s1 + $0x250] sm:$0xff]
    %v150 = vld [vmem:[%s1 + $0x258] sm:$0xff]
    %v151 = vld [vmem:[%s1 + $0x260] sm:$0xff]
    %v152 = vld [vmem:[%s1 + $0x268] sm:$0xff]
    %v153 = vld [vmem:[%s1 + $0x270] sm:$0xff]
    %v154 = vld [vmem:[%s1 + $0x278] sm:$0xff]
    %v155 = vld [vmem:[%s1 + $0x280] sm:$0xff]
    %v156 = vld [vmem:[%s1 + $0x288] sm:$0xff]
    %v157 = vld [vmem:[%s1 + $0x290] sm:$0xff]
    %v158 = vld [vmem:[%s1 + $0x298] sm:$0xff]
    %v159 = vld [vmem:[%s1 + $0x2a0] sm:$0xff]
    %v160 = vld [vmem:[%s1 + $0x2a8] sm:$0xff]
    %v161 = vld [vmem:[%s1 + $0x2b0] sm:$0xff]
    %v162 = vld [vmem:[%s1 + $0x2b8] sm:$0xff]
    %v163 = vld [vmem:[%s1 + $0x2c0] sm:$0xff]
    %v164 = vld [vmem:[%s1 + $0x2c8] sm:$0xff]
    %v165 = vld [vmem:[%s1 + $0x2d0] sm:$0xff]
    %v166 = vld [vmem:[%s1 + $0x2d8] sm:$0xff]
    %v167 = vld [vmem:[%s1 + $0x2e0] sm:$0xff]
    %v168 = vld [vmem:[%s1 + $0x2e8] sm:$0xff]
    %v169 = vld [vmem:[%s1 + $0x2f0] sm:$0xff]
    %v170 = vld [vmem:[%s1 + $0x2f8] sm:$0xff]
    %v171 = vld [vmem:[%s1 + $0x300] sm:$0xff]
    %v172 = vld [vmem:[%s1 + $0x308] sm:$0xff]
    %v173 = vld [vmem:[%s1 + $0x310] sm:$0xff]
    %v174 = vld [vmem:[%s1 + $0x318] sm:$0xff]
    %v175 = vld [vmem:[%s1 + $0x320] sm:$0xff]
    %v176 = vld [vmem:[%s1 + $0x328] sm:$0xff]
    %v177 = vld [vmem:[%s1 + $0x330] sm:$0xff]
    %v178 = vld [vmem:[%s1 + $0x338] sm:$0xff]
    %v179 = vld [vmem:[%s1 + $0x340] sm:$0xff]
    %v180 = vld [vmem:[%s1 + $0x348] sm:$0xff]
    %v181 = vld [vmem:[%s1 + $0x350] sm:$0xff]
    %v182 = vld [vmem:[%s1 + $0x358] sm:$0xff]
    %v183 = vld [vmem:[%s1 + $0x360] sm:$0xff]
    %v184 = vld [vmem:[%s1 + $0x368] sm:$0xff]
    %v185 = vld [vmem:[%s1 + $0x370] sm:$0xff]
    %v186 = vld [vmem:[%s1 + $0x378] sm:$0xff]
    %v187 = vld [vmem:[%s1 + $0x380] sm:$0xff]
    %v188 = vld [vmem:[%s1 + $0x388] sm:$0xff]
    %v189 = vld [vmem:[%s1 + $0x390] sm:$0xff]
    %v190 = vld [vmem:[%s1 + $0x398] sm:$0xff]
    %v191 = vld [vmem:[%s1 + $0x3a0] sm:$0xff]
    %v192 = vld [vmem:[%s1 + $0x3a8] sm:$0xff]
    %v193 = vld [vmem:[%s1 + $0x3b0] sm:$0xff]
    %v194 = vld [vmem:[%s1 + $0x3b8] sm:$0xff]
    %v195 = vld [vmem:[%s1 + $0x3c0] sm:$0xff]
    %v196 = vld [vmem:[%s1 + $0x3c8] sm:$0xff]
    %v197 = vld [vmem:[%s1 + $0x3d0] sm:$0xff]
    %v198 = vld [vmem:[%s1 + $0x3d8] sm:$0xff]
    %v199 = vld [vmem:[%s1 + $0x3e0] sm:$0xff]
    %v200 = vld [vmem:[%s1 + $0x3e8] sm:$0xff]
    %v201 = vld [vmem:[%s1 + $0x3f0] sm:$0xff]
    %v202 = vld [vmem:[%s1 + $0x3f8] sm:$0xff]
    %v203 = vld [vmem:[%s1 + $0x400] sm:$0xff]
    %v204 = vld [vmem:[%s1 + $0x408] sm:$0xff]
    %v205 = vld [vmem:[%s1 + $0x410] sm:$0xff]
    %v206 = vld [vmem:[%s1 + $0x418] sm:$0xff]
    %v207 = vld [vmem:[%s1 + $0x420] sm:$0xff]
    %v208 = vld [vmem:[%s1 + $0x428] sm:$0xff]
    %v209 = vld [vmem:[%s1 + $0x430] sm:$0xff]
    %v210 = vld [vmem:[%s1 + $0x438] sm:$0xff]
    %v211 = vld [vmem:[%s1 + $0x440] sm:$0xff]
    %v212 = vld [vmem:[%s1 + $0x448] sm:$0xff]
    %v213 = vld [vmem:[%s1 + $0x450] sm:$0xff]
    %v214 = vld [vmem:[%s1 + $0x458] sm:$0xff]
    %v215 = vld [vmem:[%s1 + $0x460] sm:$0xff]
    %v216 = vld [vmem:[%s1 + $0x468] sm:$0xff]
    %v217 = vld [vmem:[%s1 + $0x470] sm:$0xff]
    %v218 = vld [vmem:[%s1 + $0x478] sm:$0xff]
    %v219 = vld [vmem:[%s1 + $0x480] sm:$0xff]
    %v220 = vld [vmem:[%s1 + $0x488] sm:$0xff]
    %v221 = vld [vmem:[%s1 + $0x490] sm:$0xff]
    %v222 = vld [vmem:[%s1 + $0x498] sm:$0xff]
    %v223 = vld [vmem:[%s1 + $0x4a0] sm:$0xff]
    %v224 = vld [vmem:[%s1 + $0x4a8] sm:$0xff]
    %v225 = vld [vmem:[%s1 + $0x4b0] sm:$0xff]
    %v226 = vld [vmem:[%s1 + $0x4b8] sm:$0xff]
    %v227 = vld [vmem:[%s1 + $0x4c0] sm:$0xff]
    %v228 = vld [vmem:[%s1 + $0x4c8] sm:$0xff]
    %v229 = vld [vmem:[%s1 + $0x4d0] sm:$0xff]
    %v230 = vld [vmem:[%s1 + $0x4d8] sm:$0xff]
    %v231 = vld [vmem:[%s1 + $0x4e0] sm:$0xff]
    %v232 = vld [vmem:[%s1 + $0x4e8] sm:$0xff]
    %v233 = vld [vmem:[%s1 + $0x4f0] sm:$0xff]
    %v234 = vld [vmem:[%s1 + $0x4f8] sm:$0xff]
    %235 = vmatprep.subr.mxu0 0.0
    %236 = vmatpush1.msra.mxu0 %v90
    %237 = vmatprep.subr.mxu0 0.0
    %238 = vmatpush1.msra.mxu0 %v89
    %239 = vmatprep.subr.mxu0 0.0
    %240 = vmatpush1.msra.mxu0 %v88
    %241 = vmatprep.subr.mxu0 0.0
    %242 = vmatpush1.msra.mxu0 %v87
    %243 = vmatprep.subr.mxu0 0.0
    %244 = vmatpush1.msra.mxu0 %v86
    %245 = vmatprep.subr.mxu0 0.0
    %246 = vmatpush1.msra.mxu0 %v85
    %247 = vmatprep.subr.mxu0 0.0
    %248 = vmatpush1.msra.mxu0 %v84
    %249 = vmatprep.subr.mxu0 0.0
    %250 = vmatpush1.msra.mxu0 %v83
    %251 = vmatprep.subr.mxu0 0.0
    %252 = vmatpush1.msra.mxu0 %v82
    %253 = vmatprep.subr.mxu0 0.0
    %254 = vmatpush1.msra.mxu0 %v81
    %255 = vmatprep.subr.mxu0 0.0
    %256 = vmatpush1.msra.mxu0 %v80
    %257 = vmatprep.subr.mxu0 0.0
    %258 = vmatpush1.msra.mxu0 %v79
    %259 = vmatprep.subr.mxu0 0.0
    %260 = vmatpush1.msra.mxu0 %v78
    %261 = vmatprep.subr.mxu0 0.0
    %262 = vmatpush1.msra.mxu0 %v77
    %263 = vmatprep.subr.mxu0 0.0
    %264 = vmatpush1.msra.mxu0 %v76
    %265 = vmatprep.subr.mxu0 0.0
    %266 = vmatpush1.msra.mxu0 %v75
    %267 = vmatprep.subr.mxu0 0.0
    %268 = vmatpush2.msra.mxu0 %v106
    %269 = vmatprep.subr.mxu0 0.0
    %270 = vmatpush2.msra.mxu0 %v105
    %271 = vmatprep.subr.mxu0 0.0
    %272 = vmatpush2.msra.mxu0 %v104
    %273 = vmatprep.subr.mxu0 0.0
    %274 = vmatpush2.msra.mxu0 %v103
    %275 = vmatprep.subr.mxu0 0.0
    %276 = vmatpush2.msra.mxu0 %v102
    %277 = vmatprep.subr.mxu0 0.0
    %278 = vmatpush2.msra.mxu0 %v101
    %279 = vmatprep.subr.mxu0 0.0
    %280 = vmatpush2.msra.mxu0 %v100
    %281 = vmatprep.subr.mxu0 0.0
    %282 = vmatpush2.msra.mxu0 %v99
    %283 = vmatprep.subr.mxu0 0.0
    %284 = vmatpush2.msra.mxu0 %v98
    %285 = vmatprep.subr.mxu0 0.0
    %286 = vmatpush2.msra.mxu0 %v97
    %287 = vmatprep.subr.mxu0 0.0
    %288 = vmatpush2.msra.mxu0 %v96
    %289 = vmatprep.subr.mxu0 0.0
    %290 = vmatpush2.msra.mxu0 %v95
    %291 = vmatprep.subr.mxu0 0.0
    %292 = vmatpush2.msra.mxu0 %v94
    %293 = vmatprep.subr.mxu0 0.0
    %294 = vmatpush2.msra.mxu0 %v93
    %295 = vmatprep.subr.mxu0 0.0
    %296 = vmatpush2.msra.mxu0 %v92
    %297 = vmatprep.subr.mxu0 0.0
    %298 = vmatpush2.msra.mxu0 %v91
    %299 = vmatprep.mubr.f32.mxu0 %v36
    %300 = vmatmul.mubr.f32.gmra.mxu0 %v35
    %v301 = vpop.f32.mrf.mxu0
    %v302 = vadd.f32 0.0, %v301
    %v303 = vpop.f32.mrf.mxu0
    %304 = vmatprep.mubr.f32.mxu0 %v46
    %305 = vmatmul.mubr.f32.gmra.mxu0 %v45
    %v306 = vpop.f32.mrf.mxu0
    %v307 = vadd.f32 0.0, %v306
    %v308 = vpop.f32.mrf.mxu0
    %309 = vmatprep.mubr.f32.mxu0 %v56
    %310 = vmatmul.mubr.f32.gmra.mxu0 %v55
    %v311 = vpop.f32.mrf.mxu0
    %v312 = vadd.f32 0.0, %v311
    %v313 = vpop.f32.mrf.mxu0
    %314 = vmatprep.mubr.f32.mxu0 %v66
    %315 = vmatmul.mubr.f32.gmra.mxu0 %v65
    %v316 = vpop.f32.mrf.mxu0
    %v317 = vadd.f32 0.0, %v316
    %v318 = vpop.f32.mrf.mxu0
    %319 = vdwg.mxu0
    %320 = vmatprep.subr.mxu0 0.0
    %321 = vmatpush1.msra.mxu0 %v122
    %322 = vmatprep.subr.mxu0 0.0
    %323 = vmatpush1.msra.mxu0 %v121
    %324 = vmatprep.subr.mxu0 0.0
    %325 = vmatpush1.msra.mxu0 %v120
    %326 = vmatprep.subr.mxu0 0.0
    %327 = vmatpush1.msra.mxu0 %v119
    %328 = vmatprep.subr.mxu0 0.0
    %329 = vmatpush1.msra.mxu0 %v118
    %330 = vmatprep.subr.mxu0 0.0
    %331 = vmatpush1.msra.mxu0 %v117
    %332 = vmatprep.subr.mxu0 0.0
    %333 = vmatpush1.msra.mxu0 %v116
    %334 = vmatprep.subr.mxu0 0.0
    %335 = vmatpush1.msra.mxu0 %v115
    %336 = vmatprep.subr.mxu0 0.0
    %337 = vmatpush1.msra.mxu0 %v114
    %338 = vmatprep.subr.mxu0 0.0
    %339 = vmatpush1.msra.mxu0 %v113
    %340 = vmatprep.subr.mxu0 0.0
    %341 = vmatpush1.msra.mxu0 %v112
    %342 = vmatprep.subr.mxu0 0.0
    %343 = vmatpush1.msra.mxu0 %v111
    %344 = vmatprep.subr.mxu0 0.0
    %345 = vmatpush1.msra.mxu0 %v110
    %346 = vmatprep.subr.mxu0 0.0
    %347 = vmatpush1.msra.mxu0 %v109
    %348 = vmatprep.subr.mxu0 0.0
    %349 = vmatpush1.msra.mxu0 %v108
    %350 = vmatprep.subr.mxu0 0.0
    %351 = vmatpush1.msra.mxu0 %v107
    %352 = vmatprep.subr.mxu0 0.0
    %353 = vmatpush2.msra.mxu0 %v138
    %354 = vmatprep.subr.mxu0 0.0
    %355 = vmatpush2.msra.mxu0 %v137
    %356 = vmatprep.subr.mxu0 0.0
    %357 = vmatpush2.msra.mxu0 %v136
    %358 = vmatprep.subr.mxu0 0.0
    %359 = vmatpush2.msra.mxu0 %v135
    %360 = vmatprep.subr.mxu0 0.0
    %361 = vmatpush2.msra.mxu0 %v134
    %362 = vmatprep.subr.mxu0 0.0
    %363 = vmatpush2.msra.mxu0 %v133
    %364 = vmatprep.subr.mxu0 0.0
    %365 = vmatpush2.msra.mxu0 %v132
    %366 = vmatprep.subr.mxu0 0.0
    %367 = vmatpush2.msra.mxu0 %v131
    %368 = vmatprep.subr.mxu0 0.0
    %369 = vmatpush2.msra.mxu0 %v130
    %370 = vmatprep.subr.mxu0 0.0
    %371 = vmatpush2.msra.mxu0 %v129
    %372 = vmatprep.subr.mxu0 0.0
    %373 = vmatpush2.msra.mxu0 %v128
    %374 = vmatprep.subr.mxu0 0.0
    %375 = vmatpush2.msra.mxu0 %v127
    %376 = vmatprep.subr.mxu0 0.0
    %377 = vmatpush2.msra.mxu0 %v126
    %378 = vmatprep.subr.mxu0 0.0
    %379 = vmatpush2.msra.mxu0 %v125
    %380 = vmatprep.subr.mxu0 0.0
    %381 = vmatpush2.msra.mxu0 %v124
    %382 = vmatprep.subr.mxu0 0.0
    %383 = vmatpush2.msra.mxu0 %v123
    %384 = vmatprep.mubr.f32.mxu0 %v38
    %385 = vmatmul.mubr.f32.gmra.mxu0 %v37
    %v386 = vpop.f32.mrf.mxu0
    %v387 = vadd.f32 %v302, %v386
    %v388 = vpop.f32.mrf.mxu0
    %389 = vmatprep.mubr.f32.mxu0 %v48
    %390 = vmatmul.mubr.f32.gmra.mxu0 %v47
    %v391 = vpop.f32.mrf.mxu0
    %v392 = vadd.f32 %v307, %v391
    %v393 = vpop.f32.mrf.mxu0
    %394 = vmatprep.mubr.f32.mxu0 %v58
    %395 = vmatmul.mubr.f32.gmra.mxu0 %v57
    %v396 = vpop.f32.mrf.mxu0
    %v397 = vadd.f32 %v312, %v396
    %v398 = vpop.f32.mrf.mxu0
    %399 = vmatprep.mubr.f32.mxu0 %v68
    %400 = vmatmul.mubr.f32.gmra.mxu0 %v67
    %v401 = vpop.f32.mrf.mxu0
    %v402 = vadd.f32 %v317, %v401
    %v403 = vpop.f32.mrf.mxu0
    %404 = vdwg.mxu0
    %405 = vmatprep.subr.mxu0 0.0
    %406 = vmatpush1.msra.mxu0 %v154
    %407 = vmatprep.subr.mxu0 0.0
    %408 = vmatpush1.msra.mxu0 %v153
    %409 = vmatprep.subr.mxu0 0.0
    %410 = vmatpush1.msra.mxu0 %v152
    %411 = vmatprep.subr.mxu0 0.0
    %412 = vmatpush1.msra.mxu0 %v151
    %413 = vmatprep.subr.mxu0 0.0
    %414 = vmatpush1.msra.mxu0 %v150
    %415 = vmatprep.subr.mxu0 0.0
    %416 = vmatpush1.msra.mxu0 %v149
    %417 = vmatprep.subr.mxu0 0.0
    %418 = vmatpush1.msra.mxu0 %v148
    %419 = vmatprep.subr.mxu0 0.0
    %420 = vmatpush1.msra.mxu0 %v147
    %421 = vmatprep.subr.mxu0 0.0
    %422 = vmatpush1.msra.mxu0 %v146
    %423 = vmatprep.subr.mxu0 0.0
    %424 = vmatpush1.msra.mxu0 %v145
    %425 = vmatprep.subr.mxu0 0.0
    %426 = vmatpush1.msra.mxu0 %v144
    %427 = vmatprep.subr.mxu0 0.0
    %428 = vmatpush1.msra.mxu0 %v143
    %429 = vmatprep.subr.mxu0 0.0
    %430 = vmatpush1.msra.mxu0 %v142
    %431 = vmatprep.subr.mxu0 0.0
    %432 = vmatpush1.msra.mxu0 %v141
    %433 = vmatprep.subr.mxu0 0.0
    %434 = vmatpush1.msra.mxu0 %v140
    %435 = vmatprep.subr.mxu0 0.0
    %436 = vmatpush1.msra.mxu0 %v139
    %437 = vmatprep.subr.mxu0 0.0
    %438 = vmatpush2.msra.mxu0 %v170
    %439 = vmatprep.subr.mxu0 0.0
    %440 = vmatpush2.msra.mxu0 %v169
    %441 = vmatprep.subr.mxu0 0.0
    %442 = vmatpush2.msra.mxu0 %v168
    %443 = vmatprep.subr.mxu0 0.0
    %444 = vmatpush2.msra.mxu0 %v167
    %445 = vmatprep.subr.mxu0 0.0
    %446 = vmatpush2.msra.mxu0 %v166
    %447 = vmatprep.subr.mxu0 0.0
    %448 = vmatpush2.msra.mxu0 %v165
    %449 = vmatprep.subr.mxu0 0.0
    %450 = vmatpush2.msra.mxu0 %v164
    %451 = vmatprep.subr.mxu0 0.0
    %452 = vmatpush2.msra.mxu0 %v163
    %453 = vmatprep.subr.mxu0 0.0
    %454 = vmatpush2.msra.mxu0 %v162
    %455 = vmatprep.subr.mxu0 0.0
    %456 = vmatpush2.msra.mxu0 %v161
    %457 = vmatprep.subr.mxu0 0.0
    %458 = vmatpush2.msra.mxu0 %v160
    %459 = vmatprep.subr.mxu0 0.0
    %460 = vmatpush2.msra.mxu0 %v159
    %461 = vmatprep.subr.mxu0 0.0
    %462 = vmatpush2.msra.mxu0 %v158
    %463 = vmatprep.subr.mxu0 0.0
    %464 = vmatpush2.msra.mxu0 %v157
    %465 = vmatprep.subr.mxu0 0.0
    %466 = vmatpush2.msra.mxu0 %v156
    %467 = vmatprep.subr.mxu0 0.0
    %468 = vmatpush2.msra.mxu0 %v155
    %469 = vmatprep.mubr.f32.mxu0 %v40
    %470 = vmatmul.mubr.f32.gmra.mxu0 %v39
    %v471 = vpop.f32.mrf.mxu0
    %v472 = vadd.f32 %v387, %v471
    %v473 = vpop.f32.mrf.mxu0
    %474 = vmatprep.mubr.f32.mxu0 %v50
    %475 = vmatmul.mubr.f32.gmra.mxu0 %v49
    %v476 = vpop.f32.mrf.mxu0
    %v477 = vadd.f32 %v392, %v476
    %v478 = vpop.f32.mrf.mxu0
    %479 = vmatprep.mubr.f32.mxu0 %v60
    %480 = vmatmul.mubr.f32.gmra.mxu0 %v59
    %v481 = vpop.f32.mrf.mxu0
    %v482 = vadd.f32 %v397, %v481
    %v483 = vpop.f32.mrf.mxu0
    %484 = vmatprep.mubr.f32.mxu0 %v70
    %485 = vmatmul.mubr.f32.gmra.mxu0 %v69
    %v486 = vpop.f32.mrf.mxu0
    %v487 = vadd.f32 %v402, %v486
    %v488 = vpop.f32.mrf.mxu0
    %489 = vdwg.mxu0
    %490 = vmatprep.subr.mxu0 0.0
    %491 = vmatpush1.msra.mxu0 %v186
    %492 = vmatprep.subr.mxu0 0.0
    %493 = vmatpush1.msra.mxu0 %v185
    %494 = vmatprep.subr.mxu0 0.0
    %495 = vmatpush1.msra.mxu0 %v184
    %496 = vmatprep.subr.mxu0 0.0
    %497 = vmatpush1.msra.mxu0 %v183
    %498 = vmatprep.subr.mxu0 0.0
    %499 = vmatpush1.msra.mxu0 %v182
    %500 = vmatprep.subr.mxu0 0.0
    %501 = vmatpush1.msra.mxu0 %v181
    %502 = vmatprep.subr.mxu0 0.0
    %503 = vmatpush1.msra.mxu0 %v180
    %504 = vmatprep.subr.mxu0 0.0
    %505 = vmatpush1.msra.mxu0 %v179
    %506 = vmatprep.subr.mxu0 0.0
    %507 = vmatpush1.msra.mxu0 %v178
    %508 = vmatprep.subr.mxu0 0.0
    %509 = vmatpush1.msra.mxu0 %v177
    %510 = vmatprep.subr.mxu0 0.0
    %511 = vmatpush1.msra.mxu0 %v176
    %512 = vmatprep.subr.mxu0 0.0
    %513 = vmatpush1.msra.mxu0 %v175
    %514 = vmatprep.subr.mxu0 0.0
    %515 = vmatpush1.msra.mxu0 %v174
    %516 = vmatprep.subr.mxu0 0.0
    %517 = vmatpush1.msra.mxu0 %v173
    %518 = vmatprep.subr.mxu0 0.0
    %519 = vmatpush1.msra.mxu0 %v172
    %520 = vmatprep.subr.mxu0 0.0
    %521 = vmatpush1.msra.mxu0 %v171
    %522 = vmatprep.subr.mxu0 0.0
    %523 = vmatpush2.msra.mxu0 %v202
    %524 = vmatprep.subr.mxu0 0.0
    %525 = vmatpush2.msra.mxu0 %v201
    %526 = vmatprep.subr.mxu0 0.0
    %527 = vmatpush2.msra.mxu0 %v200
    %528 = vmatprep.subr.mxu0 0.0
    %529 = vmatpush2.msra.mxu0 %v199
    %530 = vmatprep.subr.mxu0 0.0
    %531 = vmatpush2.msra.mxu0 %v198
    %532 = vmatprep.subr.mxu0 0.0
    %533 = vmatpush2.msra.mxu0 %v197
    %534 = vmatprep.subr.mxu0 0.0
    %535 = vmatpush2.msra.mxu0 %v196
    %536 = vmatprep.subr.mxu0 0.0
    %537 = vmatpush2.msra.mxu0 %v195
    %538 = vmatprep.subr.mxu0 0.0
    %539 = vmatpush2.msra.mxu0 %v194
    %540 = vmatprep.subr.mxu0 0.0
    %541 = vmatpush2.msra.mxu0 %v193
    %542 = vmatprep.subr.mxu0 0.0
    %543 = vmatpush2.msra.mxu0 %v192
    %544 = vmatprep.subr.mxu0 0.0
    %545 = vmatpush2.msra.mxu0 %v191
    %546 = vmatprep.subr.mxu0 0.0
    %547 = vmatpush2.msra.mxu0 %v190
    %548 = vmatprep.subr.mxu0 0.0
    %549 = vmatpush2.msra.mxu0 %v189
    %550 = vmatprep.subr.mxu0 0.0
    %551 = vmatpush2.msra.mxu0 %v188
    %552 = vmatprep.subr.mxu0 0.0
    %553 = vmatpush2.msra.mxu0 %v187
    %554 = vmatprep.mubr.f32.mxu0 %v42
    %555 = vmatmul.mubr.f32.gmra.mxu0 %v41
    %v556 = vpop.f32.mrf.mxu0
    %v557 = vadd.f32 %v472, %v556
    %v558 = vpop.f32.mrf.mxu0
    %559 = vmatprep.mubr.f32.mxu0 %v52
    %560 = vmatmul.mubr.f32.gmra.mxu0 %v51
    %v561 = vpop.f32.mrf.mxu0
    %v562 = vadd.f32 %v477, %v561
    %v563 = vpop.f32.mrf.mxu0
    %564 = vmatprep.mubr.f32.mxu0 %v62
    %565 = vmatmul.mubr.f32.gmra.mxu0 %v61
    %v566 = vpop.f32.mrf.mxu0
    %v567 = vadd.f32 %v482, %v566
    %v568 = vpop.f32.mrf.mxu0
    %569 = vmatprep.mubr.f32.mxu0 %v72
    %570 = vmatmul.mubr.f32.gmra.mxu0 %v71
    %v571 = vpop.f32.mrf.mxu0
    %v572 = vadd.f32 %v487, %v571
    %v573 = vpop.f32.mrf.mxu0
    %574 = vdwg.mxu0
    %575 = vmatprep.subr.mxu0 0.0
    %576 = vmatpush1.msra.mxu0 %v218
    %577 = vmatprep.subr.mxu0 0.0
    %578 = vmatpush1.msra.mxu0 %v217
    %579 = vmatprep.subr.mxu0 0.0
    %580 = vmatpush1.msra.mxu0 %v216
    %581 = vmatprep.subr.mxu0 0.0
    %582 = vmatpush1.msra.mxu0 %v215
    %583 = vmatprep.subr.mxu0 0.0
    %584 = vmatpush1.msra.mxu0 %v214
    %585 = vmatprep.subr.mxu0 0.0
    %586 = vmatpush1.msra.mxu0 %v213
    %587 = vmatprep.subr.mxu0 0.0
    %588 = vmatpush1.msra.mxu0 %v212
    %589 = vmatprep.subr.mxu0 0.0
    %590 = vmatpush1.msra.mxu0 %v211
    %591 = vmatprep.subr.mxu0 0.0
    %592 = vmatpush1.msra.mxu0 %v210
    %593 = vmatprep.subr.mxu0 0.0
    %594 = vmatpush1.msra.mxu0 %v209
    %595 = vmatprep.subr.mxu0 0.0
    %596 = vmatpush1.msra.mxu0 %v208
    %597 = vmatprep.subr.mxu0 0.0
    %598 = vmatpush1.msra.mxu0 %v207
    %599 = vmatprep.subr.mxu0 0.0
    %600 = vmatpush1.msra.mxu0 %v206
    %601 = vmatprep.subr.mxu0 0.0
    %602 = vmatpush1.msra.mxu0 %v205
    %603 = vmatprep.subr.mxu0 0.0
    %604 = vmatpush1.msra.mxu0 %v204
    %605 = vmatprep.subr.mxu0 0.0
    %606 = vmatpush1.msra.mxu0 %v203
    %607 = vmatprep.subr.mxu0 0.0
    %608 = vmatpush2.msra.mxu0 %v234
    %609 = vmatprep.subr.mxu0 0.0
    %610 = vmatpush2.msra.mxu0 %v233
    %611 = vmatprep.subr.mxu0 0.0
    %612 = vmatpush2.msra.mxu0 %v232
    %613 = vmatprep.subr.mxu0 0.0
    %614 = vmatpush2.msra.mxu0 %v231
    %615 = vmatprep.subr.mxu0 0.0
    %616 = vmatpush2.msra.mxu0 %v230
    %617 = vmatprep.subr.mxu0 0.0
    %618 = vmatpush2.msra.mxu0 %v229
    %619 = vmatprep.subr.mxu0 0.0
    %620 = vmatpush2.msra.mxu0 %v228
    %621 = vmatprep.subr.mxu0 0.0
    %622 = vmatpush2.msra.mxu0 %v227
    %623 = vmatprep.subr.mxu0 0.0
    %624 = vmatpush2.msra.mxu0 %v226
    %625 = vmatprep.subr.mxu0 0.0
    %626 = vmatpush2.msra.mxu0 %v225
    %627 = vmatprep.subr.mxu0 0.0
    %628 = vmatpush2.msra.mxu0 %v224
    %629 = vmatprep.subr.mxu0 0.0
    %630 = vmatpush2.msra.mxu0 %v223
    %631 = vmatprep.subr.mxu0 0.0
    %632 = vmatpush2.msra.mxu0 %v222
    %633 = vmatprep.subr.mxu0 0.0
    %634 = vmatpush2.msra.mxu0 %v221
    %635 = vmatprep.subr.mxu0 0.0
    %636 = vmatpush2.msra.mxu0 %v220
    %637 = vmatprep.subr.mxu0 0.0
    %638 = vmatpush2.msra.mxu0 %v219
    %639 = vmatprep.mubr.f32.mxu0 %v44
    %640 = vmatmul.mubr.f32.gmra.mxu0 %v43
    %v641 = vpop.f32.mrf.mxu0
    %v642 = vadd.f32 %v557, %v641
    %v643 = vpop.f32.mrf.mxu0
    %644 = vmatprep.mubr.f32.mxu0 %v54
    %645 = vmatmul.mubr.f32.gmra.mxu0 %v53
    %v646 = vpop.f32.mrf.mxu0
    %v647 = vadd.f32 %v562, %v646
    %v648 = vpop.f32.mrf.mxu0
    %649 = vmatprep.mubr.f32.mxu0 %v64
    %650 = vmatmul.mubr.f32.gmra.mxu0 %v63
    %v651 = vpop.f32.mrf.mxu0
    %v652 = vadd.f32 %v567, %v651
    %v653 = vpop.f32.mrf.mxu0
    %654 = vmatprep.mubr.f32.mxu0 %v74
    %655 = vmatmul.mubr.f32.gmra.mxu0 %v73
    %v656 = vpop.f32.mrf.mxu0
    %v657 = vadd.f32 %v572, %v656
    %v658 = vpop.f32.mrf.mxu0
    %659 = vdwg.mxu0
    %vm660 = vcmask 64512
    %v661 = vsel %vm660, %v642, 0.0
    %v662 = vsel %vm660, %v647, 0.0
    %v663 = vadd.f32 %v661, %v662
    %v664 = vrot.slane %v663, 4
    %v665 = vadd.f32 %v663, %v664
    %v666 = vrot.slane %v665, 2
    %v667 = vadd.f32 %v665, %v666
    %v668 = vrot.slane %v667, 1
    %v669 = vadd.f32 %v667, %v668
    %v670 = vsel %vm660, %v652, 0.0
    %v671 = vsel %vm660, %v657, 0.0
    %v672 = vadd.f32 %v670, %v671
    %v673 = vrot.slane %v672, 4
    %v674 = vadd.f32 %v672, %v673
    %v675 = vrot.slane %v674, 2
    %v676 = vadd.f32 %v674, %v675
    %v677 = vrot.slane %v676, 1
    %v678 = vadd.f32 %v676, %v677
    %v679 = vld [vmem:[%s2] sm:$0x1]
    %v681 = vlaneseq
    %v682 = vshrl.u32 %v681, 7
    %v683 = vsub.s32 0, %v682
    %v684 = vrot.slane %v679, %v683
    %v686 = vadd.f32 %v669, %v684
    %v687 = vadd.f32 %v678, %v684
    %v690 = vrot.slane %v687, 7
    %vm691 = vcmask 1041409
    %v692 = vsel %vm691, %v690, %v686
    %vm694 = vcmask 58368
    %695 = vst.msk [vmem:[#allocation2] sm:$0x3] %vm694, %v692
    // Predicated region
    $region14: #{tpu_custom_call.1} parent=1 // pred_check
      _
    $region15: #{tpu_custom_call.1} parent=1 // pred_check_branch
      %697 = sbr.rel (0) target = $region17
    $region16: #{tpu_custom_call.1} parent=1 // pred_region
      %s699 = ssub.s32 32, 32
      %700 = vsyncadd [#allocation3], %s699
      %s702 = sshll.u32 [#allocation2], 4
      %s703 = int_to_ptr.vmem [resolvable:$true] %s702
      %705 = dma.vmem_to_hbm [thread:$0]  %s703, 32, %s3, [#allocation3]
    $region17: #{tpu_custom_call.1} parent=1 // pred_fallthru
      _
    // Predicated region
    $region18: #{tpu_custom_call.1} parent=1 // pred_check
      _
    $region19: #{tpu_custom_call.1} parent=1 // pred_check_branch
      %707 = sbr.rel (0) target = $region21
    $region20: #{tpu_custom_call.1} parent=1 // pred_region
      %708 = dma.done [#allocation3], 32
    $region21: #{tpu_custom_call.1} parent=1 // pred_fallthru
      _
    %709 = vsyncpa [#allocation3], 1

</llo_original>
